<compile_context>
chip_gen: v6e
topology: v6e:2x2x1
jax: 0.10.0
libtpu: 0.0.40
codegen_flags: <defaults>
</compile_context>

<pallas_src>
import functools
import math

import jax
import jax.numpy as jnp
from jax.experimental import pallas as pl
from jax.experimental.pallas import tpu as pltpu


_LANE = 128      # lane width: pad every feature dim to a multiple of this
_SUBLANE = 16    # bf16 sublane packing: pad every row count to a multiple


def _round_up(x, m):
    return (x + m - 1) // m * m


def _pad_cast(x, rows, cols, dtype=jnp.bfloat16):
    """Zero-pad a 2-D array to (rows, cols) and cast (bf16 MXU operands)."""
    r, c = x.shape
    return jnp.pad(x.astype(dtype), ((0, rows - r), (0, cols - c)))


# ----------------------------------------------------------------------------
# Shared math (called on VMEM values inside the kernel AND from the pure-JAX
# reference). MXU inputs are bf16, accumulation/bias/inter-layer values f32.
# ----------------------------------------------------------------------------
def _mm(x, w, b):
    return jnp.dot(x.astype(jnp.bfloat16), w,
                   preferred_element_type=jnp.float32) + b


def _encode_segments(pc, w_l1, b_l1, w_l2, b_l2, *, mp, ep):
    """Packed speech-encoder/connector + prenet0/prenet1 on stacked frames.

    pc = [prompt_frames; continuation_frames] stacked on M. Layer 1 weights
    are N-packed ([w_se | w_p0]); layer 2 weights are block-diagonal
    (blockdiag(w_cn, w_p1)), so the wasted cross terms multiply exact zeros.
    """
    y1 = _mm(pc, w_l1, b_l1)                      # (Mp+Mc, SEp+Hp)  f32
    y2 = _mm(y1, w_l2, b_l2)                      # (Mp+Mc, 2*Ep)    f32
    prompt_emb = y2[:mp, :ep].astype(jnp.bfloat16)        # connector output
    cont_emb = y2[mp:, ep:2 * ep].astype(jnp.bfloat16)    # prenet output
    return prompt_emb, cont_emb


def _lm_and_heads(lm_in, w_lm, b_lm, w_th, b_th, w_q0, b_q0, w_q1, b_q1,
                  *, mp, mt):
    # TODO(synk): SmolLM-360M decoder stand-in (single position-wise linear).
    lm_out = _mm(lm_in, w_lm, b_lm)               # (Mall, Ep) f32
    trans_h = lm_out[mp:mp + mt]                  # transcript positions
    cont_all_h = lm_out[mp + mt:]                 # continuation frames + eos
    logits = _mm(trans_h, w_th, b_th)             # text head (f32)
    post = _mm(_mm(cont_all_h, w_q0, b_q0), w_q1, b_q1)    # postnet (f32)
    return logits, post


# ----------------------------------------------------------------------------
# Fused Pallas kernel: everything VMEM resident, single grid step.
# ----------------------------------------------------------------------------
def _spectron_fused_kernel(pc_ref, trans_ref, eos_ref,
                           w_l1_ref, b_l1_ref, w_l2_ref, b_l2_ref,
                           w_lm_ref, b_lm_ref, w_th_ref, b_th_ref,
                           w_q0_ref, b_q0_ref, w_q1_ref, b_q1_ref,
                           logits_ref, post_ref, lm_ref,
                           *, mp, mt, mc, me, ep):
    prompt_emb, cont_emb = _encode_segments(
        pc_ref[...], w_l1_ref[...], b_l1_ref[...], w_l2_ref[...], b_l2_ref[...],
        mp=mp, ep=ep)

    # Assemble the LM input slab in place (static 16-aligned row offsets;
    # unmasked lane-dense stores) — no concat / slice VMEM copies.
    lm_ref[pl.ds(0, mp), :] = prompt_emb
    lm_ref[pl.ds(mp, mt), :] = trans_ref[...]
    lm_ref[pl.ds(mp + mt, mc), :] = cont_emb
    lm_ref[pl.ds(mp + mt + mc, me), :] = eos_ref[...]

    logits, post = _lm_and_heads(
        lm_ref[...], w_lm_ref[...], b_lm_ref[...], w_th_ref[...], b_th_ref[...],
        w_q0_ref[...], b_q0_ref[...], w_q1_ref[...], b_q1_ref[...],
        mp=mp, mt=mt)

    logits_ref[...] = logits.astype(logits_ref.dtype)
    post_ref[...] = post.astype(post_ref.dtype)


# ----------------------------------------------------------------------------
# Parameter construction: deterministic, padded & MXU-packed ONCE here.
# ----------------------------------------------------------------------------
def make_params(key, *, mel_dims, speech_emb_dim, lm_emb_dim, hidden, vocab_size):
    keys = jax.random.split(key, 9)

    def lin(k, fan_in, fan_out):
        kw, kb = jax.random.split(k)
        scale = 1.0 / jnp.sqrt(fan_in)
        w = jax.random.uniform(kw, (fan_in, fan_out), jnp.float32, -scale, scale)
        b = jax.random.uniform(kb, (fan_out,), jnp.float32, -scale, scale)
        return w, b

    # TODO(synk): Whisper encoder stand-in (single linear) -> connector.
    w_se, b_se = lin(keys[0], mel_dims, speech_emb_dim)
    w_cn, b_cn = lin(keys[1], speech_emb_dim, lm_emb_dim)
    w_p0, b_p0 = lin(keys[2], mel_dims, hidden)
    w_p1, b_p1 = lin(keys[3], hidden, lm_emb_dim)
    w_q0, b_q0 = lin(keys[4], lm_emb_dim, hidden)
    w_q1, b_q1 = lin(keys[5], hidden, mel_dims)
    w_th, b_th = lin(keys[6], lm_emb_dim, vocab_size)
    w_lm, b_lm = lin(keys[7], lm_emb_dim, lm_emb_dim)
    embed = jax.random.normal(keys[8], (vocab_size, lm_emb_dim), jnp.float32) * 0.02

    MELp = _round_up(mel_dims, _LANE)
    SEp = _round_up(speech_emb_dim, _LANE)
    Hp = _round_up(hidden, _LANE)
    Ep = _round_up(lm_emb_dim, _LANE)
    Vp = _round_up(vocab_size, _LANE)

    def padw(w, rows, cols):
        out = jnp.zeros((rows, cols), jnp.bfloat16)
        return out.at[:w.shape[0], :w.shape[1]].set(w.astype(jnp.bfloat16))

    def padb(b, cols):
        return jnp.zeros((1, cols), jnp.float32).at[0, :b.shape[0]].set(b)

    # Packed layer 1: rhs = [w_se | w_p0]  (K=MELp, N=SEp+Hp).
    w_l1 = jnp.concatenate([padw(w_se, MELp, SEp), padw(w_p0, MELp, Hp)], axis=1)
    b_l1 = jnp.concatenate([padb(b_se, SEp), padb(b_p0, Hp)], axis=1)
    # Packed layer 2: rhs = blockdiag(w_cn, w_p1)  (K=SEp+Hp, N=2*Ep).
    w_l2 = jnp.zeros((SEp + Hp, 2 * Ep), jnp.bfloat16)
    w_l2 = w_l2.at[:w_cn.shape[0], :w_cn.shape[1]].set(w_cn.astype(jnp.bfloat16))
    w_l2 = w_l2.at[SEp:SEp + w_p1.shape[0], Ep:Ep + w_p1.shape[1]].set(
        w_p1.astype(jnp.bfloat16))
    b_l2 = jnp.concatenate([padb(b_cn, Ep), padb(b_p1, Ep)], axis=1)

    return {
        "w_l1": w_l1, "b_l1": b_l1, "w_l2": w_l2, "b_l2": b_l2,
        "w_lm": padw(w_lm, Ep, Ep), "b_lm": padb(b_lm, Ep),
        "w_th": padw(w_th, Ep, Vp), "b_th": padb(b_th, Vp),
        "w_q0": padw(w_q0, Ep, Hp), "b_q0": padb(b_q0, Hp),
        "w_q1": padw(w_q1, Hp, MELp), "b_q1": padb(b_q1, MELp),
        "embed": embed,            # token embedding table (lookup stays in JAX)
    }


# ----------------------------------------------------------------------------
# Input preparation / output finalization (padding + glue ops)
# ----------------------------------------------------------------------------
def _prepare(params, prompt, transcript_tokens, continuation, eos_token_id):
    B, Tp, mel = prompt.shape
    Tt = transcript_tokens.shape[1]
    Tc = continuation.shape[1]
    vocab, E = params["embed"].shape

    MELp = params["w_l1"].shape[0]
    Ep = params["w_lm"].shape[0]

    Mp = _round_up(B * Tp, _SUBLANE)
    Mt = _round_up(B * Tt, _SUBLANE)
    Mc = _round_up(B * Tc, _SUBLANE)
    Me = _round_up(B, _SUBLANE)

    prompt_p = _pad_cast(prompt.reshape(B * Tp, mel), Mp, MELp)
    cont_p = _pad_cast(continuation.reshape(B * Tc, mel), Mc, MELp)
    pc_p = jnp.concatenate([prompt_p, cont_p], axis=0)        # (Mp+Mc, MELp)

    # TODO(synk): fold these gathers into the kernel via PrefetchScalarGridSpec.
    trans_emb = jnp.take(params["embed"], transcript_tokens, axis=0)
    trans_p = _pad_cast(trans_emb.reshape(B * Tt, E), Mt, Ep)
    eos_emb = jnp.broadcast_to(params["embed"][eos_token_id][None, :], (B, E))
    eos_p = _pad_cast(eos_emb, Me, Ep)

    acts = [pc_p, trans_p, eos_p]
    wb = [params[n] for n in ("w_l1", "b_l1", "w_l2", "b_l2", "w_lm", "b_lm",
                              "w_th", "b_th", "w_q0", "b_q0", "w_q1", "b_q1")]
    meta = dict(B=B, Tt=Tt, Tc=Tc, mel=mel, vocab=vocab,
                Mp=Mp, Mt=Mt, Mc=Mc, Me=Me,
                MELp=MELp, Ep=Ep, Vp=params["w_th"].shape[1])
    return acts, wb, meta


def _finalize(logits_p, post_p, meta):
    B, Tt, Tc = meta["B"], meta["Tt"], meta["Tc"]
    mel, vocab, Mc = meta["mel"], meta["vocab"], meta["Mc"]
    transcript_logits = logits_p[:B * Tt, :vocab].reshape(B, Tt, vocab)
    cont_mel = post_p[:B * Tc, :mel].reshape(B, Tc, mel)
    eos_mel = post_p[Mc:Mc + B, :mel].reshape(B, 1, mel)
    continuation_mel = jnp.concatenate([cont_mel, eos_mel], axis=1)  # (B,Tc+1,mel)
    return transcript_logits, continuation_mel


# ----------------------------------------------------------------------------
# Spectron forward pass — single fused pallas_call
# ----------------------------------------------------------------------------
def spectron_forward(params, prompt, transcript_tokens, continuation, eos_token_id):
    acts, wb, meta = _prepare(params, prompt, transcript_tokens, continuation,
                              eos_token_id)
    inputs = acts + wb
    Mp, Mt, Mc, Me = meta["Mp"], meta["Mt"], meta["Mc"], meta["Me"]
    Ep, MELp, Vp = meta["Ep"], meta["MELp"], meta["Vp"]
    Mall = Mp + Mt + Mc + Me

    kernel = functools.partial(_spectron_fused_kernel,
                               mp=Mp, mt=Mt, mc=Mc, me=Me, ep=Ep)

    out_shape = (
        jax.ShapeDtypeStruct((Mt, Vp), jnp.float32),        # transcript logits
        jax.ShapeDtypeStruct((Mc + Me, MELp), jnp.float32),  # postnet slab
    )

    def spec2d(shape):
        # Whole-array block, single grid step (< 1 MiB total at these sizes).
        return pl.BlockSpec(shape, lambda: (0, 0))

    # Explicit VMEM budget: resident inputs/outputs (double-buffered) + scratch
    # + headroom, clamped to stay within every generation's scoped VMEM.
    resident = sum(x.size * x.dtype.itemsize for x in inputs)
    resident += sum(math.prod(s.shape) * 4 for s in out_shape)
    vmem_limit = int(min(max(2 * resident + Mall * Ep * 2 + (4 << 20),
                             16 << 20), 48 << 20))

    outs = pl.pallas_call(
        kernel,
        out_shape=out_shape,
        in_specs=[spec2d(a.shape) for a in inputs],
        out_specs=tuple(spec2d(s.shape) for s in out_shape),
        scratch_shapes=[pltpu.VMEM((Mall, Ep), jnp.bfloat16)],  # lm_input slab
        compiler_params=pltpu.CompilerParams(vmem_limit_bytes=vmem_limit),
    )(*inputs)

    return _finalize(outs[0], outs[1], meta)


def spectron_forward_reference(params, prompt, transcript_tokens, continuation,
                               eos_token_id):
    """Plain-JAX reference mirroring the kernel math exactly (for checking)."""
    acts, wb, meta = _prepare(params, prompt, transcript_tokens, continuation,
                              eos_token_id)
    pc, trans, eos = acts
    (w_l1, b_l1, w_l2, b_l2, w_lm, b_lm,
     w_th, b_th, w_q0, b_q0, w_q1, b_q1) = wb
    prompt_emb, cont_emb = _encode_segments(pc, w_l1, b_l1, w_l2, b_l2,
                                            mp=meta["Mp"], ep=meta["Ep"])
    lm_in = jnp.concatenate([prompt_emb, trans, cont_emb, eos], axis=0)
    logits, post = _lm_and_heads(lm_in, w_lm, b_lm, w_th, b_th,
                                 w_q0, b_q0, w_q1, b_q1,
                                 mp=meta["Mp"], mt=meta["Mt"])
    return _finalize(logits, post, meta)


# ----------------------------------------------------------------------------
if __name__ == "__main__":
    # Small, self-consistent stand-in shapes.
    B, Tp, Tt, Tc = 2, 6, 5, 8
    MEL_DIMS = 32        # mel_dims
    SPEECH_EMB = 64      # stands in for 512
    LM_EMB = 48          # stands in for SmolLM hidden_size
    HIDDEN = 40          # stands in for 360
    VOCAB = 64           # stands in for SmolLM vocab_size
    EOS_ID = VOCAB - 1

    key = jax.random.PRNGKey(0)
    k_par, k_p, k_t, k_c = jax.random.split(key, 4)

    params = make_params(
        k_par, mel_dims=MEL_DIMS, speech_emb_dim=SPEECH_EMB,
        lm_emb_dim=LM_EMB, hidden=HIDDEN, vocab_size=VOCAB)

    prompt = jax.random.normal(k_p, (B, Tp, MEL_DIMS), jnp.float32)
    transcript_tokens = jax.random.randint(k_t, (B, Tt), 0, VOCAB, jnp.int32)
    continuation = jax.random.normal(k_c, (B, Tc, MEL_DIMS), jnp.float32)

    fwd = jax.jit(functools.partial(spectron_forward, eos_token_id=EOS_ID))
    transcript_logits, continuation_mel = fwd(
        params, prompt, transcript_tokens, continuation)
    jax.block_until_ready((transcript_logits, continuation_mel))

    assert transcript_logits.shape == (B, Tt, VOCAB), transcript_logits.shape
    assert continuation_mel.shape == (B, Tc + 1, MEL_DIMS), continuation_mel.shape
    assert bool(jnp.all(jnp.isfinite(transcript_logits)))
    assert bool(jnp.all(jnp.isfinite(continuation_mel)))

    # Correctness check against a plain-JAX mirror of the same (bf16-MXU,
    # f32-interlayer) math. Tolerance covers accumulation-order differences.
    ref_fwd = jax.jit(functools.partial(spectron_forward_reference,
                                        eos_token_id=EOS_ID))
    ref_logits, ref_mel = ref_fwd(params, prompt, transcript_tokens, continuation)
    jax.block_until_ready((ref_logits, ref_mel))
    err_l = float(jnp.max(jnp.abs(transcript_logits - ref_logits)))
    err_m = float(jnp.max(jnp.abs(continuation_mel - ref_mel)))
    assert err_l < 1e-2 and err_m < 1e-2, (err_l, err_m)

    print("KERNEL_OK")
</pallas_src>

<mosaic_0001>
module attributes {stable_mosaic.version = 11 : i64} {
  func.func @_spectron_fused_kernel(%arg0: memref<32x128xbf16, #tpu.memory_space<vmem>>, %arg1: memref<16x128xbf16, #tpu.memory_space<vmem>>, %arg2: memref<16x128xbf16, #tpu.memory_space<vmem>>, %arg3: memref<128x256xbf16, #tpu.memory_space<vmem>>, %arg4: memref<1x256xf32, #tpu.memory_space<vmem>>, %arg5: memref<256x256xbf16, #tpu.memory_space<vmem>>, %arg6: memref<1x256xf32, #tpu.memory_space<vmem>>, %arg7: memref<128x128xbf16, #tpu.memory_space<vmem>>, %arg8: memref<1x128xf32, #tpu.memory_space<vmem>>, %arg9: memref<128x128xbf16, #tpu.memory_space<vmem>>, %arg10: memref<1x128xf32, #tpu.memory_space<vmem>>, %arg11: memref<128x128xbf16, #tpu.memory_space<vmem>>, %arg12: memref<1x128xf32, #tpu.memory_space<vmem>>, %arg13: memref<128x128xbf16, #tpu.memory_space<vmem>>, %arg14: memref<1x128xf32, #tpu.memory_space<vmem>>, %arg15: memref<16x128xf32, #tpu.memory_space<vmem>>, %arg16: memref<32x128xf32, #tpu.memory_space<vmem>>, %arg17: memref<64x128xbf16, #tpu.memory_space<vmem>>) attributes {dimension_semantics = [], scalar_prefetch = 0 : i64, scratch_operands = 1 : i64, tpu.core_type = #tpu.core_type<tc>} {
    %c0 = arith.constant 0 : index
    %c0_0 = arith.constant 0 : index
    %0 = vector.load %arg0[%c0, %c0_0] : memref<32x128xbf16, #tpu.memory_space<vmem>>, vector<32x128xbf16>
    %c0_1 = arith.constant 0 : index
    %c0_2 = arith.constant 0 : index
    %1 = vector.load %arg3[%c0_1, %c0_2] : memref<128x256xbf16, #tpu.memory_space<vmem>>, vector<128x256xbf16>
    %c0_3 = arith.constant 0 : index
    %c0_4 = arith.constant 0 : index
    %2 = vector.load %arg4[%c0_3, %c0_4] : memref<1x256xf32, #tpu.memory_space<vmem>>, vector<1x256xf32>
    %c0_5 = arith.constant 0 : index
    %c0_6 = arith.constant 0 : index
    %3 = vector.load %arg5[%c0_5, %c0_6] : memref<256x256xbf16, #tpu.memory_space<vmem>>, vector<256x256xbf16>
    %c0_7 = arith.constant 0 : index
    %c0_8 = arith.constant 0 : index
    %4 = vector.load %arg6[%c0_7, %c0_8] : memref<1x256xf32, #tpu.memory_space<vmem>>, vector<1x256xf32>
    %cst = arith.constant dense<0.000000e+00> : vector<32x256xf32>
    %5 = tpu.matmul %0, %1, %cst {dimension_numbers = #tpu.dot_dimension_numbers<[1], [0], [0], [1], [0, 0, 1, 1], [], []>} : vector<32x128xbf16>, vector<128x256xbf16>, vector<32x256xf32> -> vector<32x256xf32>
    %6 = vector.broadcast %2 : vector<1x256xf32> to vector<32x256xf32>
    %7 = arith.addf %5, %6 : vector<32x256xf32>
    %8 = arith.truncf %7 : vector<32x256xf32> to vector<32x256xbf16>
    %cst_9 = arith.constant dense<0.000000e+00> : vector<32x256xf32>
    %9 = tpu.matmul %8, %3, %cst_9 {dimension_numbers = #tpu.dot_dimension_numbers<[1], [0], [0], [1], [0, 0, 1, 1], [], []>} : vector<32x256xbf16>, vector<256x256xbf16>, vector<32x256xf32> -> vector<32x256xf32>
    %10 = vector.broadcast %4 : vector<1x256xf32> to vector<32x256xf32>
    %11 = arith.addf %9, %10 : vector<32x256xf32>
    %12 = vector.extract_strided_slice %11 {offsets = [0, 0], sizes = [16, 128], strides = [1, 1]} : vector<32x256xf32> to vector<16x128xf32>
    %13 = arith.truncf %12 : vector<16x128xf32> to vector<16x128xbf16>
    %14 = vector.extract_strided_slice %11 {offsets = [16, 128], sizes = [16, 128], strides = [1, 1]} : vector<32x256xf32> to vector<16x128xf32>
    %15 = arith.truncf %14 : vector<16x128xf32> to vector<16x128xbf16>
    %c0_10 = arith.constant 0 : index
    %c0_11 = arith.constant 0 : index
    %16 = vector.load %arg17[%c0_10, %c0_11] : memref<64x128xbf16, #tpu.memory_space<vmem>>, vector<16x128xbf16>
    tpu.vector_store %arg17[%c0_10, %c0_11], %13 {strides = array<i32>} : memref<64x128xbf16, #tpu.memory_space<vmem>>, vector<16x128xbf16>,
    %c0_12 = arith.constant 0 : index
    %c0_13 = arith.constant 0 : index
    %17 = vector.load %arg1[%c0_12, %c0_13] : memref<16x128xbf16, #tpu.memory_space<vmem>>, vector<16x128xbf16>
    %c16 = arith.constant 16 : index
    %c0_14 = arith.constant 0 : index
    %18 = vector.load %arg17[%c16, %c0_14] : memref<64x128xbf16, #tpu.memory_space<vmem>>, vector<16x128xbf16>
    tpu.vector_store %arg17[%c16, %c0_14], %17 {strides = array<i32>} : memref<64x128xbf16, #tpu.memory_space<vmem>>, vector<16x128xbf16>,
    %c32 = arith.constant 32 : index
    %c0_15 = arith.constant 0 : index
    %19 = vector.load %arg17[%c32, %c0_15] : memref<64x128xbf16, #tpu.memory_space<vmem>>, vector<16x128xbf16>
    tpu.vector_store %arg17[%c32, %c0_15], %15 {strides = array<i32>} : memref<64x128xbf16, #tpu.memory_space<vmem>>, vector<16x128xbf16>,
    %c0_16 = arith.constant 0 : index
    %c0_17 = arith.constant 0 : index
    %20 = vector.load %arg2[%c0_16, %c0_17] : memref<16x128xbf16, #tpu.memory_space<vmem>>, vector<16x128xbf16>
    %c48 = arith.constant 48 : index
    %c0_18 = arith.constant 0 : index
    %21 = vector.load %arg17[%c48, %c0_18] : memref<64x128xbf16, #tpu.memory_space<vmem>>, vector<16x128xbf16>
    tpu.vector_store %arg17[%c48, %c0_18], %20 {strides = array<i32>} : memref<64x128xbf16, #tpu.memory_space<vmem>>, vector<16x128xbf16>,
    %c0_19 = arith.constant 0 : index
    %c0_20 = arith.constant 0 : index
    %22 = vector.load %arg17[%c0_19, %c0_20] : memref<64x128xbf16, #tpu.memory_space<vmem>>, vector<64x128xbf16>
    %c0_21 = arith.constant 0 : index
    %c0_22 = arith.constant 0 : index
    %23 = vector.load %arg7[%c0_21, %c0_22] : memref<128x128xbf16, #tpu.memory_space<vmem>>, vector<128x128xbf16>
    %c0_23 = arith.constant 0 : index
    %c0_24 = arith.constant 0 : index
    %24 = vector.load %arg8[%c0_23, %c0_24] : memref<1x128xf32, #tpu.memory_space<vmem>>, vector<1x128xf32>
    %c0_25 = arith.constant 0 : index
    %c0_26 = arith.constant 0 : index
    %25 = vector.load %arg9[%c0_25, %c0_26] : memref<128x128xbf16, #tpu.memory_space<vmem>>, vector<128x128xbf16>
    %c0_27 = arith.constant 0 : index
    %c0_28 = arith.constant 0 : index
    %26 = vector.load %arg10[%c0_27, %c0_28] : memref<1x128xf32, #tpu.memory_space<vmem>>, vector<1x128xf32>
    %c0_29 = arith.constant 0 : index
    %c0_30 = arith.constant 0 : index
    %27 = vector.load %arg11[%c0_29, %c0_30] : memref<128x128xbf16, #tpu.memory_space<vmem>>, vector<128x128xbf16>
    %c0_31 = arith.constant 0 : index
    %c0_32 = arith.constant 0 : index
    %28 = vector.load %arg12[%c0_31, %c0_32] : memref<1x128xf32, #tpu.memory_space<vmem>>, vector<1x128xf32>
    %c0_33 = arith.constant 0 : index
    %c0_34 = arith.constant 0 : index
    %29 = vector.load %arg13[%c0_33, %c0_34] : memref<128x128xbf16, #tpu.memory_space<vmem>>, vector<128x128xbf16>
    %c0_35 = arith.constant 0 : index
    %c0_36 = arith.constant 0 : index
    %30 = vector.load %arg14[%c0_35, %c0_36] : memref<1x128xf32, #tpu.memory_space<vmem>>, vector<1x128xf32>
    %cst_37 = arith.constant dense<0.000000e+00> : vector<64x128xf32>
    %31 = tpu.matmul %22, %23, %cst_37 {dimension_numbers = #tpu.dot_dimension_numbers<[1], [0], [0], [1], [0, 0, 1, 1], [], []>} : vector<64x128xbf16>, vector<128x128xbf16>, vector<64x128xf32> -> vector<64x128xf32>
    %32 = vector.broadcast %24 : vector<1x128xf32> to vector<64x128xf32>
    %33 = arith.addf %31, %32 : vector<64x128xf32>
    %34 = vector.extract_strided_slice %33 {offsets = [16, 0], sizes = [16, 128], strides = [1, 1]} : vector<64x128xf32> to vector<16x128xf32>
    %35 = vector.extract_strided_slice %33 {offsets = [32, 0], sizes = [32, 128], strides = [1, 1]} : vector<64x128xf32> to vector<32x128xf32>
    %36 = arith.truncf %34 : vector<16x128xf32> to vector<16x128xbf16>
    %cst_38 = arith.constant dense<0.000000e+00> : vector<16x128xf32>
    %37 = tpu.matmul %36, %25, %cst_38 {dimension_numbers = #tpu.dot_dimension_numbers<[1], [0], [0], [1], [0, 0, 1, 1], [], []>} : vector<16x128xbf16>, vector<128x128xbf16>, vector<16x128xf32> -> vector<16x128xf32>
    %38 = vector.broadcast %26 : vector<1x128xf32> to vector<16x128xf32>
    %39 = arith.addf %37, %38 : vector<16x128xf32>
    %40 = arith.truncf %35 : vector<32x128xf32> to vector<32x128xbf16>
    %cst_39 = arith.constant dense<0.000000e+00> : vector<32x128xf32>
    %41 = tpu.matmul %40, %27, %cst_39 {dimension_numbers = #tpu.dot_dimension_numbers<[1], [0], [0], [1], [0, 0, 1, 1], [], []>} : vector<32x128xbf16>, vector<128x128xbf16>, vector<32x128xf32> -> vector<32x128xf32>
    %42 = vector.broadcast %28 : vector<1x128xf32> to vector<32x128xf32>
    %43 = arith.addf %41, %42 : vector<32x128xf32>
    %44 = arith.truncf %43 : vector<32x128xf32> to vector<32x128xbf16>
    %cst_40 = arith.constant dense<0.000000e+00> : vector<32x128xf32>
    %45 = tpu.matmul %44, %29, %cst_40 {dimension_numbers = #tpu.dot_dimension_numbers<[1], [0], [0], [1], [0, 0, 1, 1], [], []>} : vector<32x128xbf16>, vector<128x128xbf16>, vector<32x128xf32> -> vector<32x128xf32>
    %46 = vector.broadcast %30 : vector<1x128xf32> to vector<32x128xf32>
    %47 = arith.addf %45, %46 : vector<32x128xf32>
    %c0_41 = arith.constant 0 : index
    %c0_42 = arith.constant 0 : index
    %48 = vector.load %arg15[%c0_41, %c0_42] : memref<16x128xf32, #tpu.memory_space<vmem>>, vector<16x128xf32>
    tpu.vector_store %arg15[%c0_41, %c0_42], %39 {strides = array<i32>} : memref<16x128xf32, #tpu.memory_space<vmem>>, vector<16x128xf32>,
    %c0_43 = arith.constant 0 : index
    %c0_44 = arith.constant 0 : index
    %49 = vector.load %arg16[%c0_43, %c0_44] : memref<32x128xf32, #tpu.memory_space<vmem>>, vector<32x128xf32>
    tpu.vector_store %arg16[%c0_43, %c0_44], %47 {strides = array<i32>} : memref<32x128xf32, #tpu.memory_space<vmem>>, vector<32x128xf32>,
    return
  }
}

</mosaic_0001>

<llo_original>
// kernel: spectron_forward.1
$region0: #{spectron_forward.1}
  #allocation0 [shape = 'u32[]', space=smem, size = 0x4, offset = 0x4, fixed_abs, tag = 'smem constant byte address 0x4 - core index']
  #allocation1 [shape = 'u32[144,128]{1,0:T(1,128)}', space=vmem, size = 0x12000, scoped, tag = 'internal scratch']
  #allocation2 [shape = 'bf16[64,128]{1,0:T(8,128)(2,1)}', space=vmem, size = 0x4000, scoped, tag = 'scratch operand']
  %s0 = inlined_call_operand.vmem [shape: bf16[32,128], index: 0, kind: input, shape index: {}]
  %s1 = inlined_call_operand.vmem [shape: bf16[16,128], index: 1, kind: input, shape index: {}]
  %s2 = inlined_call_operand.vmem [shape: bf16[16,128], index: 2, kind: input, shape index: {}]
  %s3 = inlined_call_operand.hbm [shape: bf16[128,256], index: 3, kind: input, shape index: {}]
  %s4 = inlined_call_operand.vmem [shape: f32[1,256], index: 4, kind: input, shape index: {}]
  %s5 = inlined_call_operand.vmem [shape: bf16[256,256], index: 5, kind: input, shape index: {}]
  %s6 = inlined_call_operand.vmem [shape: f32[1,256], index: 6, kind: input, shape index: {}]
  %s7 = inlined_call_operand.hbm [shape: bf16[128,128], index: 7, kind: input, shape index: {}]
  %s8 = inlined_call_operand.vmem [shape: f32[1,128], index: 8, kind: input, shape index: {}]
  %s9 = inlined_call_operand.hbm [shape: bf16[128,128], index: 9, kind: input, shape index: {}]
  %s10 = inlined_call_operand.vmem [shape: f32[1,128], index: 10, kind: input, shape index: {}]
  %s11 = inlined_call_operand.hbm [shape: bf16[128,128], index: 11, kind: input, shape index: {}]
  %s12 = inlined_call_operand.vmem [shape: f32[1,128], index: 12, kind: input, shape index: {}]
  %s13 = inlined_call_operand.hbm [shape: bf16[128,128], index: 13, kind: input, shape index: {}]
  %s14 = inlined_call_operand.vmem [shape: f32[1,128], index: 14, kind: input, shape index: {}]
  %s15 = inlined_call_operand.vmem [shape: f32[16,128], index: 15, kind: output, shape index: {0}]
  %s16 = inlined_call_operand.vmem [shape: f32[32,128], index: 16, kind: output, shape index: {1}]
  %17 = xla_tuple %s15, %s16
  %s18 = sld [smem:[#allocation0]]
  $region98: #{spectron_forward.1} parent=0
    _
  %s20 = ssub.s32 1, %s18
  %s21 = scalar_select 0, %s20, %s18
  $region1: #{spectron_forward.1} parent=0
    #allocation3 [shape = 'u8[65536]{0}', space=vmem, size = 0x10000, scoped, tag = 'input window, operand 3, single buffered']
    #allocation4 [shape = 's32[1]{0}', space=sflag, size = 0x4, scoped, tag = 'scoped memory for spectron_forward.1']
    #allocation5 [shape = 'u8[32768]{0}', space=vmem, size = 0x8000, scoped, tag = 'input window, operand 7, single buffered']
    #allocation6 [shape = 's32[1]{0}', space=sflag, size = 0x4, scoped, tag = 'scoped memory for spectron_forward.1']
    #allocation7 [shape = 'u8[32768]{0}', space=vmem, size = 0x8000, scoped, tag = 'input window, operand 9, single buffered']
    #allocation8 [shape = 'u8[32768]{0}', space=vmem, size = 0x8000, scoped, tag = 'input window, operand 11, single buffered']
    #allocation9 [shape = 's32[1]{0}', space=sflag, size = 0x4, scoped, tag = 'scoped memory for spectron_forward.1']
    #allocation10 [shape = 'u8[32768]{0}', space=vmem, size = 0x8000, scoped, tag = 'input window, operand 13, single buffered']
    %22 = vsyncpa [#allocation4], 0
    %23 = vsyncpa [#allocation6], 0
    %24 = vsyncpa [#allocation9], 0
    // Predicated region
    $region2: #{spectron_forward.1} parent=1 // pred_check
      _
    $region3: #{spectron_forward.1} parent=1 // pred_check_branch
      %26 = sbr.rel (0) target = $region5
    $region4: #{spectron_forward.1} parent=1 // pred_region
      _
    $region5: #{spectron_forward.1} parent=1 // pred_fallthru
      _
    // Predicated region
    $region6: #{spectron_forward.1} parent=1 // pred_check
      _
    $region7: #{spectron_forward.1} parent=1 // pred_check_branch
      %28 = sbr.rel (0) target = $region9
    $region8: #{spectron_forward.1} parent=1 // pred_region
      _
    $region9: #{spectron_forward.1} parent=1 // pred_fallthru
      _
    // Predicated region
    $region10: #{spectron_forward.1} parent=1 // pred_check
      _
    $region11: #{spectron_forward.1} parent=1 // pred_check_branch
      %30 = sbr.rel (0) target = $region13
    $region12: #{spectron_forward.1} parent=1 // pred_region
      _
    $region13: #{spectron_forward.1} parent=1 // pred_fallthru
      _
    // Predicated region
    $region14: #{spectron_forward.1} parent=1 // pred_check
      _
    $region15: #{spectron_forward.1} parent=1 // pred_check_branch
      %32 = sbr.rel (0) target = $region17
    $region16: #{spectron_forward.1} parent=1 // pred_region
      %s34 = ssub.s32 2048, 2048
      %35 = vsyncadd [#allocation4], %s34
      %s36 = sshll.u32 [#allocation3], 4
      %s37 = int_to_ptr.vmem [resolvable:$true] %s36
      %42 = dma.hbm_to_vmem [thread:$0]  %s3, 2048, %s37, [#allocation4], 128, 128, 8
    $region17: #{spectron_forward.1} parent=1 // pred_fallthru
      _
    // Predicated region
    $region18: #{spectron_forward.1} parent=1 // pred_check
      _
    $region19: #{spectron_forward.1} parent=1 // pred_check_branch
      %44 = sbr.rel (0) target = $region21
    $region20: #{spectron_forward.1} parent=1 // pred_region
      _
    $region21: #{spectron_forward.1} parent=1 // pred_fallthru
      _
    // Predicated region
    $region22: #{spectron_forward.1} parent=1 // pred_check
      _
    $region23: #{spectron_forward.1} parent=1 // pred_check_branch
      %46 = sbr.rel (0) target = $region25
    $region24: #{spectron_forward.1} parent=1 // pred_region
      _
    $region25: #{spectron_forward.1} parent=1 // pred_fallthru
      _
    // Predicated region
    $region26: #{spectron_forward.1} parent=1 // pred_check
      _
    $region27: #{spectron_forward.1} parent=1 // pred_check_branch
      %48 = sbr.rel (0) target = $region29
    $region28: #{spectron_forward.1} parent=1 // pred_region
      _
    $region29: #{spectron_forward.1} parent=1 // pred_fallthru
      _
    // Predicated region
    $region30: #{spectron_forward.1} parent=1 // pred_check
      _
    $region31: #{spectron_forward.1} parent=1 // pred_check_branch
      %50 = sbr.rel (0) target = $region33
    $region32: #{spectron_forward.1} parent=1 // pred_region
      %s52 = ssub.s32 1024, 1024
      %53 = vsyncadd [#allocation6], %s52
      %s54 = sshll.u32 [#allocation5], 4
      %s55 = int_to_ptr.vmem [resolvable:$true] %s54
      %60 = dma.hbm_to_vmem [thread:$0]  %s7, 1024, %s55, [#allocation6], 64, 64, 4
    $region33: #{spectron_forward.1} parent=1 // pred_fallthru
      _
    // Predicated region
    $region34: #{spectron_forward.1} parent=1 // pred_check
      _
    $region35: #{spectron_forward.1} parent=1 // pred_check_branch
      %62 = sbr.rel (0) target = $region37
    $region36: #{spectron_forward.1} parent=1 // pred_region
      _
    $region37: #{spectron_forward.1} parent=1 // pred_fallthru
      _
    // Predicated region
    $region38: #{spectron_forward.1} parent=1 // pred_check
      _
    $region39: #{spectron_forward.1} parent=1 // pred_check_branch
      %64 = sbr.rel (0) target = $region41
    $region40: #{spectron_forward.1} parent=1 // pred_region
      %s66 = ssub.s32 1024, 1024
      %67 = vsyncadd [#allocation6], %s66
      %s68 = sshll.u32 [#allocation7], 4
      %s69 = int_to_ptr.vmem [resolvable:$true] %s68
      %74 = dma.hbm_to_vmem [thread:$0]  %s9, 1024, %s69, [#allocation6], 64, 64, 4
    $region41: #{spectron_forward.1} parent=1 // pred_fallthru
      _
    // Predicated region
    $region42: #{spectron_forward.1} parent=1 // pred_check
      _
    $region43: #{spectron_forward.1} parent=1 // pred_check_branch
      %76 = sbr.rel (0) target = $region45
    $region44: #{spectron_forward.1} parent=1 // pred_region
      _
    $region45: #{spectron_forward.1} parent=1 // pred_fallthru
      _
    // Predicated region
    $region46: #{spectron_forward.1} parent=1 // pred_check
      _
    $region47: #{spectron_forward.1} parent=1 // pred_check_branch
      %78 = sbr.rel (0) target = $region49
    $region48: #{spectron_forward.1} parent=1 // pred_region
      %s80 = ssub.s32 1024, 1024
      %81 = vsyncadd [#allocation9], %s80
      %s82 = sshll.u32 [#allocation8], 4
      %s83 = int_to_ptr.vmem [resolvable:$true] %s82
      %88 = dma.hbm_to_vmem [thread:$0]  %s11, 1024, %s83, [#allocation9], 64, 64, 4
    $region49: #{spectron_forward.1} parent=1 // pred_fallthru
      _
    // Predicated region
    $region50: #{spectron_forward.1} parent=1 // pred_check
      _
    $region51: #{spectron_forward.1} parent=1 // pred_check_branch
      %90 = sbr.rel (0) target = $region53
    $region52: #{spectron_forward.1} parent=1 // pred_region
      _
    $region53: #{spectron_forward.1} parent=1 // pred_fallthru
      _
    // Predicated region
    $region54: #{spectron_forward.1} parent=1 // pred_check
      _
    $region55: #{spectron_forward.1} parent=1 // pred_check_branch
      %92 = sbr.rel (0) target = $region57
    $region56: #{spectron_forward.1} parent=1 // pred_region
      %s94 = ssub.s32 1024, 1024
      %95 = vsyncadd [#allocation9], %s94
      %s96 = sshll.u32 [#allocation10], 4
      %s97 = int_to_ptr.vmem [resolvable:$true] %s96
      %102 = dma.hbm_to_vmem [thread:$0]  %s13, 1024, %s97, [#allocation9], 64, 64, 4
    $region57: #{spectron_forward.1} parent=1 // pred_fallthru
      _
    // Predicated region
    $region58: #{spectron_forward.1} parent=1 // pred_check
      _
    $region59: #{spectron_forward.1} parent=1 // pred_check_branch
      %104 = sbr.rel (0) target = $region61
    $region60: #{spectron_forward.1} parent=1 // pred_region
      _
    $region61: #{spectron_forward.1} parent=1 // pred_fallthru
      _
    // Predicated region
    $region62: #{spectron_forward.1} parent=1 // pred_check
      _
    $region63: #{spectron_forward.1} parent=1 // pred_check_branch
      %106 = sbr.rel (0) target = $region65
    $region64: #{spectron_forward.1} parent=1 // pred_region
      %107 = dma.done [#allocation4], 2048
    $region65: #{spectron_forward.1} parent=1 // pred_fallthru
      _
    // Predicated region
    $region66: #{spectron_forward.1} parent=1 // pred_check
      _
    $region67: #{spectron_forward.1} parent=1 // pred_check_branch
      %109 = sbr.rel (0) target = $region69
    $region68: #{spectron_forward.1} parent=1 // pred_region
      %110 = dma.done [#allocation6], 1024
    $region69: #{spectron_forward.1} parent=1 // pred_fallthru
      _
    // Predicated region
    $region70: #{spectron_forward.1} parent=1 // pred_check
      _
    $region71: #{spectron_forward.1} parent=1 // pred_check_branch
      %112 = sbr.rel (0) target = $region73
    $region72: #{spectron_forward.1} parent=1 // pred_region
      %113 = dma.done [#allocation6], 1024
    $region73: #{spectron_forward.1} parent=1 // pred_fallthru
      _
    // Predicated region
    $region74: #{spectron_forward.1} parent=1 // pred_check
      _
    $region75: #{spectron_forward.1} parent=1 // pred_check_branch
      %115 = sbr.rel (0) target = $region77
    $region76: #{spectron_forward.1} parent=1 // pred_region
      %116 = dma.done [#allocation9], 1024
    $region77: #{spectron_forward.1} parent=1 // pred_fallthru
      _
    // Predicated region
    $region78: #{spectron_forward.1} parent=1 // pred_check
      _
    $region79: #{spectron_forward.1} parent=1 // pred_check_branch
      %118 = sbr.rel (0) target = $region81
    $region80: #{spectron_forward.1} parent=1 // pred_region
      %119 = dma.done [#allocation9], 1024
    $region81: #{spectron_forward.1} parent=1 // pred_fallthru
      _
    %v121 = vld [vmem:[%s0] sm:$0xf]
    %v122 = vld [vmem:[%s0 + $0x4] sm:$0xf]
    %v123 = vld [vmem:[%s0 + $0x8] sm:$0xf]
    %v124 = vld [vmem:[%s0 + $0xc] sm:$0xf]
    %v125 = vld [vmem:[#allocation3] sm:$0xff]
    %v126 = vld [vmem:[#allocation3 + $0x8] sm:$0xff]
    %v127 = vld [vmem:[#allocation3 + $0x10] sm:$0xff]
    %v128 = vld [vmem:[#allocation3 + $0x18] sm:$0xff]
    %v129 = vld [vmem:[#allocation3 + $0x20] sm:$0xff]
    %v130 = vld [vmem:[#allocation3 + $0x28] sm:$0xff]
    %v131 = vld [vmem:[#allocation3 + $0x30] sm:$0xff]
    %v132 = vld [vmem:[#allocation3 + $0x38] sm:$0xff]
    %v133 = vld [vmem:[#allocation3 + $0x40] sm:$0xff]
    %v134 = vld [vmem:[#allocation3 + $0x48] sm:$0xff]
    %v135 = vld [vmem:[#allocation3 + $0x50] sm:$0xff]
    %v136 = vld [vmem:[#allocation3 + $0x58] sm:$0xff]
    %v137 = vld [vmem:[#allocation3 + $0x60] sm:$0xff]
    %v138 = vld [vmem:[#allocation3 + $0x68] sm:$0xff]
    %v139 = vld [vmem:[#allocation3 + $0x70] sm:$0xff]
    %v140 = vld [vmem:[#allocation3 + $0x78] sm:$0xff]
    %v141 = vld [vmem:[%s4] sm:$0x3]
    %v142 = vld [vmem:[%s5] sm:$0xff]
    %v143 = vld [vmem:[%s5 + $0x8] sm:$0xff]
    %v144 = vld [vmem:[%s5 + $0x10] sm:$0xff]
    %v145 = vld [vmem:[%s5 + $0x18] sm:$0xff]
    %v146 = vld [vmem:[%s5 + $0x20] sm:$0xff]
    %v147 = vld [vmem:[%s5 + $0x28] sm:$0xff]
    %v148 = vld [vmem:[%s5 + $0x30] sm:$0xff]
    %v149 = vld [vmem:[%s5 + $0x38] sm:$0xff]
    %v150 = vld [vmem:[%s5 + $0x40] sm:$0xff]
    %v151 = vld [vmem:[%s5 + $0x48] sm:$0xff]
    %v152 = vld [vmem:[%s5 + $0x50] sm:$0xff]
    %v153 = vld [vmem:[%s5 + $0x58] sm:$0xff]
    %v154 = vld [vmem:[%s5 + $0x60] sm:$0xff]
    %v155 = vld [vmem:[%s5 + $0x68] sm:$0xff]
    %v156 = vld [vmem:[%s5 + $0x70] sm:$0xff]
    %v157 = vld [vmem:[%s5 + $0x78] sm:$0xff]
    %v158 = vld [vmem:[%s5 + $0x80] sm:$0xff]
    %v159 = vld [vmem:[%s5 + $0x88] sm:$0xff]
    %v160 = vld [vmem:[%s5 + $0x90] sm:$0xff]
    %v161 = vld [vmem:[%s5 + $0x98] sm:$0xff]
    %v162 = vld [vmem:[%s5 + $0xa0] sm:$0xff]
    %v163 = vld [vmem:[%s5 + $0xa8] sm:$0xff]
    %v164 = vld [vmem:[%s5 + $0xb0] sm:$0xff]
    %v165 = vld [vmem:[%s5 + $0xb8] sm:$0xff]
    %v166 = vld [vmem:[%s5 + $0xc0] sm:$0xff]
    %v167 = vld [vmem:[%s5 + $0xc8] sm:$0xff]
    %v168 = vld [vmem:[%s5 + $0xd0] sm:$0xff]
    %v169 = vld [vmem:[%s5 + $0xd8] sm:$0xff]
    %v170 = vld [vmem:[%s5 + $0xe0] sm:$0xff]
    %v171 = vld [vmem:[%s5 + $0xe8] sm:$0xff]
    %v172 = vld [vmem:[%s5 + $0xf0] sm:$0xff]
    %v173 = vld [vmem:[%s5 + $0xf8] sm:$0xff]
    %v174 = vld [vmem:[%s6] sm:$0x3]
    %v176 = vlaneseq
    %v177 = vshrl.u32 %v176, 7
    %v178 = vsub.s32 0, %v177
    %v179 = vrot.slane %v141, %v178
    %v180 = vlaneseq
    %v181 = vshrl.u32 %v180, 7
    %v182 = vsub.s32 1, %v181
    %v183 = vrot.slane %v141, %v182
    %v190 = vunpack.c.l.b16 %v121
    %v191 = vunpack.c.l.b16 %v122
    %v192 = vunpack.c.l.b16 %v123
    %v193 = vunpack.c.l.b16 %v124
    %v194 = vpack.c.b16 %v191, %v190
    %v195 = vpack.c.b16 %v193, %v192
    %v214 = vunpack.c.l.b16 %v125
    %v215 = vunpack.c.h.b16 %v125
    %v216 = vunpack.c.l.b16 %v126
    %v217 = vunpack.c.h.b16 %v126
    %v218 = vunpack.c.l.b16 %v127
    %v219 = vunpack.c.h.b16 %v127
    %v220 = vunpack.c.l.b16 %v128
    %v221 = vunpack.c.h.b16 %v128
    %v222 = vunpack.c.l.b16 %v129
    %v223 = vunpack.c.h.b16 %v129
    %v224 = vunpack.c.l.b16 %v130
    %v225 = vunpack.c.h.b16 %v130
    %v226 = vunpack.c.l.b16 %v131
    %v227 = vunpack.c.h.b16 %v131
    %v228 = vunpack.c.l.b16 %v132
    %v229 = vunpack.c.h.b16 %v132
    %v230 = vunpack.c.l.b16 %v133
    %v231 = vunpack.c.h.b16 %v133
    %v232 = vunpack.c.l.b16 %v134
    %v233 = vunpack.c.h.b16 %v134
    %v234 = vunpack.c.l.b16 %v135
    %v235 = vunpack.c.h.b16 %v135
    %v236 = vunpack.c.l.b16 %v136
    %v237 = vunpack.c.h.b16 %v136
    %v238 = vunpack.c.l.b16 %v137
    %v239 = vunpack.c.h.b16 %v137
    %v240 = vunpack.c.l.b16 %v138
    %v241 = vunpack.c.h.b16 %v138
    %v242 = vunpack.c.l.b16 %v139
    %v243 = vunpack.c.h.b16 %v139
    %v244 = vunpack.c.l.b16 %v140
    %v245 = vunpack.c.h.b16 %v140
    %v246 = vpack.c.b16 %v216, %v214
    %v247 = vpack.c.b16 %v217, %v215
    %v248 = vpack.c.b16 %v220, %v218
    %v249 = vpack.c.b16 %v221, %v219
    %v250 = vpack.c.b16 %v224, %v222
    %v251 = vpack.c.b16 %v225, %v223
    %v252 = vpack.c.b16 %v228, %v226
    %v253 = vpack.c.b16 %v229, %v227
    %v254 = vpack.c.b16 %v232, %v230
    %v255 = vpack.c.b16 %v233, %v231
    %v256 = vpack.c.b16 %v236, %v234
    %v257 = vpack.c.b16 %v237, %v235
    %v258 = vpack.c.b16 %v240, %v238
    %v259 = vpack.c.b16 %v241, %v239
    %v260 = vpack.c.b16 %v244, %v242
    %v261 = vpack.c.b16 %v245, %v243
    %278 = vmatprep.subr.bf16.mxu0 %v261
    %279 = vmatpush1.bf16.msra.mxu0 %v260
    %280 = vmatprep.subr.bf16.mxu0 %v259
    %281 = vmatpush1.bf16.msra.mxu0 %v258
    %282 = vmatprep.subr.bf16.mxu0 %v257
    %283 = vmatpush1.bf16.msra.mxu0 %v256
    %284 = vmatprep.subr.bf16.mxu0 %v255
    %285 = vmatpush1.bf16.msra.mxu0 %v254
    %286 = vmatprep.subr.bf16.mxu0 %v253
    %287 = vmatpush1.bf16.msra.mxu0 %v252
    %288 = vmatprep.subr.bf16.mxu0 %v251
    %289 = vmatpush1.bf16.msra.mxu0 %v250
    %290 = vmatprep.subr.bf16.mxu0 %v249
    %291 = vmatpush1.bf16.msra.mxu0 %v248
    %292 = vmatprep.subr.bf16.mxu0 %v247
    %293 = vmatpush1.bf16.msra.mxu0 %v246
    %294 = vmatprep.subr.bf16.mxu0 0
    %295 = vmatpush2.bf16.msra.mxu0 0
    %296 = vmatprep.subr.bf16.mxu0 0
    %297 = vmatpush2.bf16.msra.mxu0 0
    %298 = vmatprep.subr.bf16.mxu0 0
    %299 = vmatpush2.bf16.msra.mxu0 0
    %300 = vmatprep.subr.bf16.mxu0 0
    %301 = vmatpush2.bf16.msra.mxu0 0
    %302 = vmatprep.subr.bf16.mxu0 0
    %303 = vmatpush2.bf16.msra.mxu0 0
    %304 = vmatprep.subr.bf16.mxu0 0
    %305 = vmatpush2.bf16.msra.mxu0 0
    %306 = vmatprep.subr.bf16.mxu0 0
    %307 = vmatpush2.bf16.msra.mxu0 0
    %308 = vmatprep.subr.bf16.mxu0 0
    %309 = vmatpush2.bf16.msra.mxu0 0
    %310 = vmatprep.mubr.bf16.mxu0 0
    %311 = vmatmul.mubr.bf16.gmra.mxu0 %v194
    %v312 = vpop.f32.mrf.mxu0
    %v313 = vadd.f32 %v179, %v312
    %v314 = vpop.f32.mrf.mxu0
    %v315 = vadd.f32 %v183, %v314
    %v316 = vpop.f32.mrf.mxu0
    %v317 = vadd.f32 %v179, %v316
    %v318 = vpop.f32.mrf.mxu0
    %v319 = vadd.f32 %v183, %v318
    %320 = vmatprep.mubr.bf16.mxu0 0
    %321 = vmatmul.mubr.bf16.gmra.mxu0 %v195
    %v322 = vpop.f32.mrf.mxu0
    %v323 = vadd.f32 %v179, %v322
    %v324 = vpop.f32.mrf.mxu0
    %v325 = vadd.f32 %v183, %v324
    %v326 = vpop.f32.mrf.mxu0
    %v327 = vadd.f32 %v179, %v326
    %v328 = vpop.f32.mrf.mxu0
    %v329 = vadd.f32 %v183, %v328
    %330 = vdwg.mxu0
    %v331 = vpack.c.bf16 %v317, %v313
    %v332 = vpack.c.bf16 %v319, %v315
    %v333 = vpack.c.bf16 %v327, %v323
    %v334 = vpack.c.bf16 %v329, %v325
    %v336 = vlaneseq
    %v337 = vshrl.u32 %v336, 7
    %v338 = vsub.s32 0, %v337
    %v339 = vrot.slane %v174, %v338
    %v340 = vlaneseq
    %v341 = vshrl.u32 %v340, 7
    %v342 = vsub.s32 1, %v341
    %v343 = vrot.slane %v174, %v342
    %v378 = vunpack.c.l.b16 %v142
    %v379 = vunpack.c.h.b16 %v142
    %v380 = vunpack.c.l.b16 %v143
    %v381 = vunpack.c.h.b16 %v143
    %v382 = vunpack.c.l.b16 %v144
    %v383 = vunpack.c.h.b16 %v144
    %v384 = vunpack.c.l.b16 %v145
    %v385 = vunpack.c.h.b16 %v145
    %v386 = vunpack.c.l.b16 %v146
    %v387 = vunpack.c.h.b16 %v146
    %v388 = vunpack.c.l.b16 %v147
    %v389 = vunpack.c.h.b16 %v147
    %v390 = vunpack.c.l.b16 %v148
    %v391 = vunpack.c.h.b16 %v148
    %v392 = vunpack.c.l.b16 %v149
    %v393 = vunpack.c.h.b16 %v149
    %v394 = vunpack.c.l.b16 %v150
    %v395 = vunpack.c.h.b16 %v150
    %v396 = vunpack.c.l.b16 %v151
    %v397 = vunpack.c.h.b16 %v151
    %v398 = vunpack.c.l.b16 %v152
    %v399 = vunpack.c.h.b16 %v152
    %v400 = vunpack.c.l.b16 %v153
    %v401 = vunpack.c.h.b16 %v153
    %v402 = vunpack.c.l.b16 %v154
    %v403 = vunpack.c.h.b16 %v154
    %v404 = vunpack.c.l.b16 %v155
    %v405 = vunpack.c.h.b16 %v155
    %v406 = vunpack.c.l.b16 %v156
    %v407 = vunpack.c.h.b16 %v156
    %v408 = vunpack.c.l.b16 %v157
    %v409 = vunpack.c.h.b16 %v157
    %v410 = vunpack.c.l.b16 %v158
    %v411 = vunpack.c.h.b16 %v158
    %v412 = vunpack.c.l.b16 %v159
    %v413 = vunpack.c.h.b16 %v159
    %v414 = vunpack.c.l.b16 %v160
    %v415 = vunpack.c.h.b16 %v160
    %v416 = vunpack.c.l.b16 %v161
    %v417 = vunpack.c.h.b16 %v161
    %v418 = vunpack.c.l.b16 %v162
    %v419 = vunpack.c.h.b16 %v162
    %v420 = vunpack.c.l.b16 %v163
    %v421 = vunpack.c.h.b16 %v163
    %v422 = vunpack.c.l.b16 %v164
    %v423 = vunpack.c.h.b16 %v164
    %v424 = vunpack.c.l.b16 %v165
    %v425 = vunpack.c.h.b16 %v165
    %v426 = vunpack.c.l.b16 %v166
    %v427 = vunpack.c.h.b16 %v166
    %v428 = vunpack.c.l.b16 %v167
    %v429 = vunpack.c.h.b16 %v167
    %v430 = vunpack.c.l.b16 %v168
    %v431 = vunpack.c.h.b16 %v168
    %v432 = vunpack.c.l.b16 %v169
    %v433 = vunpack.c.h.b16 %v169
    %v434 = vunpack.c.l.b16 %v170
    %v435 = vunpack.c.h.b16 %v170
    %v436 = vunpack.c.l.b16 %v171
    %v437 = vunpack.c.h.b16 %v171
    %v438 = vunpack.c.l.b16 %v172
    %v439 = vunpack.c.h.b16 %v172
    %v440 = vunpack.c.l.b16 %v173
    %v441 = vunpack.c.h.b16 %v173
    %v442 = vpack.c.b16 %v380, %v378
    %v443 = vpack.c.b16 %v381, %v379
    %v444 = vpack.c.b16 %v384, %v382
    %v445 = vpack.c.b16 %v385, %v383
    %v446 = vpack.c.b16 %v388, %v386
    %v447 = vpack.c.b16 %v389, %v387
    %v448 = vpack.c.b16 %v392, %v390
    %v449 = vpack.c.b16 %v393, %v391
    %v450 = vpack.c.b16 %v396, %v394
    %v451 = vpack.c.b16 %v397, %v395
    %v452 = vpack.c.b16 %v400, %v398
    %v453 = vpack.c.b16 %v401, %v399
    %v454 = vpack.c.b16 %v404, %v402
    %v455 = vpack.c.b16 %v405, %v403
    %v456 = vpack.c.b16 %v408, %v406
    %v457 = vpack.c.b16 %v409, %v407
    %v458 = vpack.c.b16 %v412, %v410
    %v459 = vpack.c.b16 %v413, %v411
    %v460 = vpack.c.b16 %v416, %v414
    %v461 = vpack.c.b16 %v417, %v415
    %v462 = vpack.c.b16 %v420, %v418
    %v463 = vpack.c.b16 %v421, %v419
    %v464 = vpack.c.b16 %v424, %v422
    %v465 = vpack.c.b16 %v425, %v423
    %v466 = vpack.c.b16 %v428, %v426
    %v467 = vpack.c.b16 %v429, %v427
    %v468 = vpack.c.b16 %v432, %v430
    %v469 = vpack.c.b16 %v433, %v431
    %v470 = vpack.c.b16 %v436, %v434
    %v471 = vpack.c.b16 %v437, %v435
    %v472 = vpack.c.b16 %v440, %v438
    %v473 = vpack.c.b16 %v441, %v439
    %506 = vmatprep.subr.bf16.mxu0 %v457
    %507 = vmatpush1.bf16.msra.mxu0 %v456
    %508 = vmatprep.subr.bf16.mxu0 %v455
    %509 = vmatpush1.bf16.msra.mxu0 %v454
    %510 = vmatprep.subr.bf16.mxu0 %v453
    %511 = vmatpush1.bf16.msra.mxu0 %v452
    %512 = vmatprep.subr.bf16.mxu0 %v451
    %513 = vmatpush1.bf16.msra.mxu0 %v450
    %514 = vmatprep.subr.bf16.mxu0 %v449
    %515 = vmatpush1.bf16.msra.mxu0 %v448
    %516 = vmatprep.subr.bf16.mxu0 %v447
    %517 = vmatpush1.bf16.msra.mxu0 %v446
    %518 = vmatprep.subr.bf16.mxu0 %v445
    %519 = vmatpush1.bf16.msra.mxu0 %v444
    %520 = vmatprep.subr.bf16.mxu0 %v443
    %521 = vmatpush1.bf16.msra.mxu0 %v442
    %522 = vmatprep.subr.bf16.mxu0 %v473
    %523 = vmatpush2.bf16.msra.mxu0 %v472
    %524 = vmatprep.subr.bf16.mxu0 %v471
    %525 = vmatpush2.bf16.msra.mxu0 %v470
    %526 = vmatprep.subr.bf16.mxu0 %v469
    %527 = vmatpush2.bf16.msra.mxu0 %v468
    %528 = vmatprep.subr.bf16.mxu0 %v467
    %529 = vmatpush2.bf16.msra.mxu0 %v466
    %530 = vmatprep.subr.bf16.mxu0 %v465
    %531 = vmatpush2.bf16.msra.mxu0 %v464
    %532 = vmatprep.subr.bf16.mxu0 %v463
    %533 = vmatpush2.bf16.msra.mxu0 %v462
    %534 = vmatprep.subr.bf16.mxu0 %v461
    %535 = vmatpush2.bf16.msra.mxu0 %v460
    %536 = vmatprep.subr.bf16.mxu0 %v459
    %537 = vmatpush2.bf16.msra.mxu0 %v458
    %538 = vmatprep.mubr.bf16.mxu0 %v332
    %539 = vmatmul.mubr.bf16.gmra.mxu0 %v331
    %v540 = vpop.f32.mrf.mxu0
    %v541 = vadd.f32 %v339, %v540
    %v542 = vpop.f32.mrf.mxu0
    %v543 = vpop.f32.mrf.mxu0
    %v544 = vadd.f32 %v339, %v543
    %v545 = vpop.f32.mrf.mxu0
    %546 = vmatprep.mubr.bf16.mxu0 %v334
    %547 = vmatmul.mubr.bf16.gmra.mxu0 %v333
    %v548 = vpop.f32.mrf.mxu0
    %v549 = vpop.f32.mrf.mxu0
    %v550 = vadd.f32 %v343, %v549
    %v551 = vpop.f32.mrf.mxu0
    %v552 = vpop.f32.mrf.mxu0
    %v553 = vadd.f32 %v343, %v552
    %554 = vdwg.mxu0
    %v555 = vpack.c.bf16 %v544, %v541
    %v556 = vpack.c.bf16 %v553, %v550
    %v558 = vunpack.c.l.b16 %v555
    %v559 = vunpack.c.h.b16 %v555
    %v560 = vpack.c.b16 %v558, %v558
    %v561 = vpack.c.b16 %v559, %v559
    %564 = vst [vmem:[#allocation2] sm:$0xf] %v560
    %565 = vst [vmem:[#allocation2 + $0x4] sm:$0xf] %v561
    %v566 = vld [vmem:[%s1] sm:$0xf]
    %v567 = vld [vmem:[%s1 + $0x4] sm:$0xf]
    %568 = vst [vmem:[#allocation2 + $0x8] sm:$0xf] %v566
    %569 = vst [vmem:[#allocation2 + $0xc] sm:$0xf] %v567
    %v571 = vunpack.c.l.b16 %v556
    %v572 = vunpack.c.h.b16 %v556
    %v573 = vpack.c.b16 %v571, %v571
    %v574 = vpack.c.b16 %v572, %v572
    %577 = vst [vmem:[#allocation2 + $0x10] sm:$0xf] %v573
    %578 = vst [vmem:[#allocation2 + $0x14] sm:$0xf] %v574
    %v579 = vld [vmem:[%s2] sm:$0xf]
    %v580 = vld [vmem:[%s2 + $0x4] sm:$0xf]
    %581 = vst [vmem:[#allocation2 + $0x18] sm:$0xf] %v579
    %582 = vst [vmem:[#allocation2 + $0x1c] sm:$0xf] %v580
    %v583 = vld [vmem:[#allocation2] sm:$0xf]
    %v584 = vld [vmem:[#allocation2 + $0x4] sm:$0xf]
    %v585 = vld [vmem:[#allocation2 + $0x8] sm:$0xf]
    %v586 = vld [vmem:[#allocation2 + $0xc] sm:$0xf]
    %v587 = vld [vmem:[#allocation2 + $0x10] sm:$0xf]
    %v588 = vld [vmem:[#allocation2 + $0x14] sm:$0xf]
    %v589 = vld [vmem:[#allocation2 + $0x18] sm:$0xf]
    %v590 = vld [vmem:[#allocation2 + $0x1c] sm:$0xf]
    %v591 = vld [vmem:[#allocation5] sm:$0xf]
    %v592 = vld [vmem:[#allocation5 + $0x4] sm:$0xf]
    %v593 = vld [vmem:[#allocation5 + $0x8] sm:$0xf]
    %v594 = vld [vmem:[#allocation5 + $0xc] sm:$0xf]
    %v595 = vld [vmem:[#allocation5 + $0x10] sm:$0xf]
    %v596 = vld [vmem:[#allocation5 + $0x14] sm:$0xf]
    %v597 = vld [vmem:[#allocation5 + $0x18] sm:$0xf]
    %v598 = vld [vmem:[#allocation5 + $0x1c] sm:$0xf]
    %v599 = vld [vmem:[#allocation5 + $0x20] sm:$0xf]
    %v600 = vld [vmem:[#allocation5 + $0x24] sm:$0xf]
    %v601 = vld [vmem:[#allocation5 + $0x28] sm:$0xf]
    %v602 = vld [vmem:[#allocation5 + $0x2c] sm:$0xf]
    %v603 = vld [vmem:[#allocation5 + $0x30] sm:$0xf]
    %v604 = vld [vmem:[#allocation5 + $0x34] sm:$0xf]
    %v605 = vld [vmem:[#allocation5 + $0x38] sm:$0xf]
    %v606 = vld [vmem:[#allocation5 + $0x3c] sm:$0xf]
    %v607 = vld [vmem:[%s8] sm:$0x1]
    %v608 = vld [vmem:[#allocation7] sm:$0xf]
    %v609 = vld [vmem:[#allocation7 + $0x4] sm:$0xf]
    %v610 = vld [vmem:[#allocation7 + $0x8] sm:$0xf]
    %v611 = vld [vmem:[#allocation7 + $0xc] sm:$0xf]
    %v612 = vld [vmem:[#allocation7 + $0x10] sm:$0xf]
    %v613 = vld [vmem:[#allocation7 + $0x14] sm:$0xf]
    %v614 = vld [vmem:[#allocation7 + $0x18] sm:$0xf]
    %v615 = vld [vmem:[#allocation7 + $0x1c] sm:$0xf]
    %v616 = vld [vmem:[#allocation7 + $0x20] sm:$0xf]
    %v617 = vld [vmem:[#allocation7 + $0x24] sm:$0xf]
    %v618 = vld [vmem:[#allocation7 + $0x28] sm:$0xf]
    %v619 = vld [vmem:[#allocation7 + $0x2c] sm:$0xf]
    %v620 = vld [vmem:[#allocation7 + $0x30] sm:$0xf]
    %v621 = vld [vmem:[#allocation7 + $0x34] sm:$0xf]
    %v622 = vld [vmem:[#allocation7 + $0x38] sm:$0xf]
    %v623 = vld [vmem:[#allocation7 + $0x3c] sm:$0xf]
    %v624 = vld [vmem:[%s10] sm:$0x1]
    %v625 = vld [vmem:[#allocation8] sm:$0xf]
    %v626 = vld [vmem:[#allocation8 + $0x4] sm:$0xf]
    %v627 = vld [vmem:[#allocation8 + $0x8] sm:$0xf]
    %v628 = vld [vmem:[#allocation8 + $0xc] sm:$0xf]
    %v629 = vld [vmem:[#allocation8 + $0x10] sm:$0xf]
    %v630 = vld [vmem:[#allocation8 + $0x14] sm:$0xf]
    %v631 = vld [vmem:[#allocation8 + $0x18] sm:$0xf]
    %v632 = vld [vmem:[#allocation8 + $0x1c] sm:$0xf]
    %v633 = vld [vmem:[#allocation8 + $0x20] sm:$0xf]
    %v634 = vld [vmem:[#allocation8 + $0x24] sm:$0xf]
    %v635 = vld [vmem:[#allocation8 + $0x28] sm:$0xf]
    %v636 = vld [vmem:[#allocation8 + $0x2c] sm:$0xf]
    %v637 = vld [vmem:[#allocation8 + $0x30] sm:$0xf]
    %v638 = vld [vmem:[#allocation8 + $0x34] sm:$0xf]
    %v639 = vld [vmem:[#allocation8 + $0x38] sm:$0xf]
    %v640 = vld [vmem:[#allocation8 + $0x3c] sm:$0xf]
    %v641 = vld [vmem:[%s12] sm:$0x1]
    %v642 = vld [vmem:[#allocation10] sm:$0xf]
    %v643 = vld [vmem:[#allocation10 + $0x4] sm:$0xf]
    %v644 = vld [vmem:[#allocation10 + $0x8] sm:$0xf]
    %v645 = vld [vmem:[#allocation10 + $0xc] sm:$0xf]
    %v646 = vld [vmem:[#allocation10 + $0x10] sm:$0xf]
    %v647 = vld [vmem:[#allocation10 + $0x14] sm:$0xf]
    %v648 = vld [vmem:[#allocation10 + $0x18] sm:$0xf]
    %v649 = vld [vmem:[#allocation10 + $0x1c] sm:$0xf]
    %v650 = vld [vmem:[#allocation10 + $0x20] sm:$0xf]
    %v651 = vld [vmem:[#allocation10 + $0x24] sm:$0xf]
    %v652 = vld [vmem:[#allocation10 + $0x28] sm:$0xf]
    %v653 = vld [vmem:[#allocation10 + $0x2c] sm:$0xf]
    %v654 = vld [vmem:[#allocation10 + $0x30] sm:$0xf]
    %v655 = vld [vmem:[#allocation10 + $0x34] sm:$0xf]
    %v656 = vld [vmem:[#allocation10 + $0x38] sm:$0xf]
    %v657 = vld [vmem:[#allocation10 + $0x3c] sm:$0xf]
    %v658 = vld [vmem:[%s14] sm:$0x1]
    %v660 = vlaneseq
    %v661 = vshrl.u32 %v660, 7
    %v662 = vsub.s32 0, %v661
    %v663 = vrot.slane %v607, %v662
    %v673 = vunpack.c.l.b16 %v583
    %v674 = vunpack.c.l.b16 %v584
    %v675 = vunpack.c.l.b16 %v585
    %v676 = vunpack.c.l.b16 %v586
    %v677 = vunpack.c.l.b16 %v587
    %v678 = vunpack.c.l.b16 %v588
    %v679 = vunpack.c.l.b16 %v589
    %v680 = vunpack.c.l.b16 %v590
    %v681 = vpack.c.b16 %v674, %v673
    %v682 = vpack.c.b16 %v676, %v675
    %v683 = vpack.c.b16 %v678, %v677
    %v684 = vpack.c.b16 %v680, %v679
    %v705 = vunpack.c.l.b16 %v591
    %v706 = vunpack.c.l.b16 %v592
    %v707 = vunpack.c.l.b16 %v593
    %v708 = vunpack.c.l.b16 %v594
    %v709 = vunpack.c.l.b16 %v595
    %v710 = vunpack.c.l.b16 %v596
    %v711 = vunpack.c.l.b16 %v597
    %v712 = vunpack.c.l.b16 %v598
    %v713 = vunpack.c.l.b16 %v599
    %v714 = vunpack.c.l.b16 %v600
    %v715 = vunpack.c.l.b16 %v601
    %v716 = vunpack.c.l.b16 %v602
    %v717 = vunpack.c.l.b16 %v603
    %v718 = vunpack.c.l.b16 %v604
    %v719 = vunpack.c.l.b16 %v605
    %v720 = vunpack.c.l.b16 %v606
    %v721 = vpack.c.b16 %v706, %v705
    %v722 = vpack.c.b16 %v708, %v707
    %v723 = vpack.c.b16 %v710, %v709
    %v724 = vpack.c.b16 %v712, %v711
    %v725 = vpack.c.b16 %v714, %v713
    %v726 = vpack.c.b16 %v716, %v715
    %v727 = vpack.c.b16 %v718, %v717
    %v728 = vpack.c.b16 %v720, %v719
    %737 = vmatprep.subr.bf16.mxu0 0
    %738 = vmatpush1.bf16.msra.mxu0 %v728
    %739 = vmatprep.subr.bf16.mxu0 0
    %740 = vmatpush1.bf16.msra.mxu0 %v727
    %741 = vmatprep.subr.bf16.mxu0 0
    %742 = vmatpush1.bf16.msra.mxu0 %v726
    %743 = vmatprep.subr.bf16.mxu0 0
    %744 = vmatpush1.bf16.msra.mxu0 %v725
    %745 = vmatprep.subr.bf16.mxu0 0
    %746 = vmatpush1.bf16.msra.mxu0 %v724
    %747 = vmatprep.subr.bf16.mxu0 0
    %748 = vmatpush1.bf16.msra.mxu0 %v723
    %749 = vmatprep.subr.bf16.mxu0 0
    %750 = vmatpush1.bf16.msra.mxu0 %v722
    %751 = vmatprep.subr.bf16.mxu0 0
    %752 = vmatpush1.bf16.msra.mxu0 %v721
    %753 = vmatprep.subr.bf16.mxu0 0
    %754 = vmatpush2.bf16.msra.mxu0 0
    %755 = vmatprep.subr.bf16.mxu0 0
    %756 = vmatpush2.bf16.msra.mxu0 0
    %757 = vmatprep.subr.bf16.mxu0 0
    %758 = vmatpush2.bf16.msra.mxu0 0
    %759 = vmatprep.subr.bf16.mxu0 0
    %760 = vmatpush2.bf16.msra.mxu0 0
    %761 = vmatprep.subr.bf16.mxu0 0
    %762 = vmatpush2.bf16.msra.mxu0 0
    %763 = vmatprep.subr.bf16.mxu0 0
    %764 = vmatpush2.bf16.msra.mxu0 0
    %765 = vmatprep.subr.bf16.mxu0 0
    %766 = vmatpush2.bf16.msra.mxu0 0
    %767 = vmatprep.subr.bf16.mxu0 0
    %768 = vmatpush2.bf16.msra.mxu0 0
    %769 = vmatprep.mubr.bf16.mxu0 0
    %770 = vmatmul.mubr.bf16.gmra.mxu0 %v681
    %v771 = vpop.f32.mrf.mxu0
    %v772 = vpop.f32.mrf.mxu0
    %v773 = vpop.f32.mrf.mxu0
    %v774 = vpop.f32.mrf.mxu0
    %775 = vmatprep.mubr.bf16.mxu0 0
    %776 = vmatmul.mubr.bf16.gmra.mxu0 %v682
    %v777 = vpop.f32.mrf.mxu0
    %v778 = vadd.f32 %v663, %v777
    %v779 = vpop.f32.mrf.mxu0
    %v780 = vpop.f32.mrf.mxu0
    %v781 = vadd.f32 %v663, %v780
    %v782 = vpop.f32.mrf.mxu0
    %783 = vmatprep.mubr.bf16.mxu0 0
    %784 = vmatmul.mubr.bf16.gmra.mxu0 %v683
    %v785 = vpop.f32.mrf.mxu0
    %v786 = vadd.f32 %v663, %v785
    %v787 = vpop.f32.mrf.mxu0
    %v788 = vpop.f32.mrf.mxu0
    %v789 = vadd.f32 %v663, %v788
    %v790 = vpop.f32.mrf.mxu0
    %791 = vmatprep.mubr.bf16.mxu0 0
    %792 = vmatmul.mubr.bf16.gmra.mxu0 %v684
    %v793 = vpop.f32.mrf.mxu0
    %v794 = vadd.f32 %v663, %v793
    %v795 = vpop.f32.mrf.mxu0
    %v796 = vpop.f32.mrf.mxu0
    %v797 = vadd.f32 %v663, %v796
    %v798 = vpop.f32.mrf.mxu0
    %799 = vdwg.mxu0
    %v800 = vpack.c.bf16 %v781, %v778
    %v802 = vlaneseq
    %v803 = vshrl.u32 %v802, 7
    %v804 = vsub.s32 0, %v803
    %v805 = vrot.slane %v624, %v804
    %v823 = vunpack.c.l.b16 %v608
    %v824 = vunpack.c.l.b16 %v609
    %v825 = vunpack.c.l.b16 %v610
    %v826 = vunpack.c.l.b16 %v611
    %v827 = vunpack.c.l.b16 %v612
    %v828 = vunpack.c.l.b16 %v613
    %v829 = vunpack.c.l.b16 %v614
    %v830 = vunpack.c.l.b16 %v615
    %v831 = vunpack.c.l.b16 %v616
    %v832 = vunpack.c.l.b16 %v617
    %v833 = vunpack.c.l.b16 %v618
    %v834 = vunpack.c.l.b16 %v619
    %v835 = vunpack.c.l.b16 %v620
    %v836 = vunpack.c.l.b16 %v621
    %v837 = vunpack.c.l.b16 %v622
    %v838 = vunpack.c.l.b16 %v623
    %v839 = vpack.c.b16 %v824, %v823
    %v840 = vpack.c.b16 %v826, %v825
    %v841 = vpack.c.b16 %v828, %v827
    %v842 = vpack.c.b16 %v830, %v829
    %v843 = vpack.c.b16 %v832, %v831
    %v844 = vpack.c.b16 %v834, %v833
    %v845 = vpack.c.b16 %v836, %v835
    %v846 = vpack.c.b16 %v838, %v837
    %855 = vmatprep.subr.bf16.mxu0 0
    %856 = vmatpush1.bf16.msra.mxu0 %v846
    %857 = vmatprep.subr.bf16.mxu0 0
    %858 = vmatpush1.bf16.msra.mxu0 %v845
    %859 = vmatprep.subr.bf16.mxu0 0
    %860 = vmatpush1.bf16.msra.mxu0 %v844
    %861 = vmatprep.subr.bf16.mxu0 0
    %862 = vmatpush1.bf16.msra.mxu0 %v843
    %863 = vmatprep.subr.bf16.mxu0 0
    %864 = vmatpush1.bf16.msra.mxu0 %v842
    %865 = vmatprep.subr.bf16.mxu0 0
    %866 = vmatpush1.bf16.msra.mxu0 %v841
    %867 = vmatprep.subr.bf16.mxu0 0
    %868 = vmatpush1.bf16.msra.mxu0 %v840
    %869 = vmatprep.subr.bf16.mxu0 0
    %870 = vmatpush1.bf16.msra.mxu0 %v839
    %871 = vmatprep.subr.bf16.mxu0 0
    %872 = vmatpush2.bf16.msra.mxu0 0
    %873 = vmatprep.subr.bf16.mxu0 0
    %874 = vmatpush2.bf16.msra.mxu0 0
    %875 = vmatprep.subr.bf16.mxu0 0
    %876 = vmatpush2.bf16.msra.mxu0 0
    %877 = vmatprep.subr.bf16.mxu0 0
    %878 = vmatpush2.bf16.msra.mxu0 0
    %879 = vmatprep.subr.bf16.mxu0 0
    %880 = vmatpush2.bf16.msra.mxu0 0
    %881 = vmatprep.subr.bf16.mxu0 0
    %882 = vmatpush2.bf16.msra.mxu0 0
    %883 = vmatprep.subr.bf16.mxu0 0
    %884 = vmatpush2.bf16.msra.mxu0 0
    %885 = vmatprep.subr.bf16.mxu0 0
    %886 = vmatpush2.bf16.msra.mxu0 0
    %887 = vmatprep.mubr.bf16.mxu0 0
    %888 = vmatmul.mubr.bf16.gmra.mxu0 %v800
    %v889 = vpop.f32.mrf.mxu0
    %v890 = vadd.f32 %v805, %v889
    %v891 = vpop.f32.mrf.mxu0
    %v892 = vpop.f32.mrf.mxu0
    %v893 = vadd.f32 %v805, %v892
    %v894 = vpop.f32.mrf.mxu0
    %895 = vdwg.mxu0
    %v896 = vpack.c.bf16 %v789, %v786
    %v897 = vpack.c.bf16 %v797, %v794
    %v899 = vlaneseq
    %v900 = vshrl.u32 %v899, 7
    %v901 = vsub.s32 0, %v900
    %v902 = vrot.slane %v641, %v901
    %v920 = vunpack.c.l.b16 %v625
    %v921 = vunpack.c.l.b16 %v626
    %v922 = vunpack.c.l.b16 %v627
    %v923 = vunpack.c.l.b16 %v628
    %v924 = vunpack.c.l.b16 %v629
    %v925 = vunpack.c.l.b16 %v630
    %v926 = vunpack.c.l.b16 %v631
    %v927 = vunpack.c.l.b16 %v632
    %v928 = vunpack.c.l.b16 %v633
    %v929 = vunpack.c.l.b16 %v634
    %v930 = vunpack.c.l.b16 %v635
    %v931 = vunpack.c.l.b16 %v636
    %v932 = vunpack.c.l.b16 %v637
    %v933 = vunpack.c.l.b16 %v638
    %v934 = vunpack.c.l.b16 %v639
    %v935 = vunpack.c.l.b16 %v640
    %v936 = vpack.c.b16 %v921, %v920
    %v937 = vpack.c.b16 %v923, %v922
    %v938 = vpack.c.b16 %v925, %v924
    %v939 = vpack.c.b16 %v927, %v926
    %v940 = vpack.c.b16 %v929, %v928
    %v941 = vpack.c.b16 %v931, %v930
    %v942 = vpack.c.b16 %v933, %v932
    %v943 = vpack.c.b16 %v935, %v934
    %952 = vmatprep.subr.bf16.mxu0 0
    %953 = vmatpush1.bf16.msra.mxu0 %v943
    %954 = vmatprep.subr.bf16.mxu0 0
    %955 = vmatpush1.bf16.msra.mxu0 %v942
    %956 = vmatprep.subr.bf16.mxu0 0
    %957 = vmatpush1.bf16.msra.mxu0 %v941
    %958 = vmatprep.subr.bf16.mxu0 0
    %959 = vmatpush1.bf16.msra.mxu0 %v940
    %960 = vmatprep.subr.bf16.mxu0 0
    %961 = vmatpush1.bf16.msra.mxu0 %v939
    %962 = vmatprep.subr.bf16.mxu0 0
    %963 = vmatpush1.bf16.msra.mxu0 %v938
    %964 = vmatprep.subr.bf16.mxu0 0
    %965 = vmatpush1.bf16.msra.mxu0 %v937
    %966 = vmatprep.subr.bf16.mxu0 0
    %967 = vmatpush1.bf16.msra.mxu0 %v936
    %968 = vmatprep.subr.bf16.mxu0 0
    %969 = vmatpush2.bf16.msra.mxu0 0
    %970 = vmatprep.subr.bf16.mxu0 0
    %971 = vmatpush2.bf16.msra.mxu0 0
    %972 = vmatprep.subr.bf16.mxu0 0
    %973 = vmatpush2.bf16.msra.mxu0 0
    %974 = vmatprep.subr.bf16.mxu0 0
    %975 = vmatpush2.bf16.msra.mxu0 0
    %976 = vmatprep.subr.bf16.mxu0 0
    %977 = vmatpush2.bf16.msra.mxu0 0
    %978 = vmatprep.subr.bf16.mxu0 0
    %979 = vmatpush2.bf16.msra.mxu0 0
    %980 = vmatprep.subr.bf16.mxu0 0
    %981 = vmatpush2.bf16.msra.mxu0 0
    %982 = vmatprep.subr.bf16.mxu0 0
    %983 = vmatpush2.bf16.msra.mxu0 0
    %984 = vmatprep.mubr.bf16.mxu0 0
    %985 = vmatmul.mubr.bf16.gmra.mxu0 %v896
    %v986 = vpop.f32.mrf.mxu0
    %v987 = vadd.f32 %v902, %v986
    %v988 = vpop.f32.mrf.mxu0
    %v989 = vpop.f32.mrf.mxu0
    %v990 = vadd.f32 %v902, %v989
    %v991 = vpop.f32.mrf.mxu0
    %992 = vmatprep.mubr.bf16.mxu0 0
    %993 = vmatmul.mubr.bf16.gmra.mxu0 %v897
    %v994 = vpop.f32.mrf.mxu0
    %v995 = vadd.f32 %v902, %v994
    %v996 = vpop.f32.mrf.mxu0
    %v997 = vpop.f32.mrf.mxu0
    %v998 = vadd.f32 %v902, %v997
    %v999 = vpop.f32.mrf.mxu0
    %1000 = vdwg.mxu0
    %v1001 = vpack.c.bf16 %v990, %v987
    %v1002 = vpack.c.bf16 %v998, %v995
    %v1004 = vlaneseq
    %v1005 = vshrl.u32 %v1004, 7
    %v1006 = vsub.s32 0, %v1005
    %v1007 = vrot.slane %v658, %v1006
    %v1025 = vunpack.c.l.b16 %v642
    %v1026 = vunpack.c.l.b16 %v643
    %v1027 = vunpack.c.l.b16 %v644
    %v1028 = vunpack.c.l.b16 %v645
    %v1029 = vunpack.c.l.b16 %v646
    %v1030 = vunpack.c.l.b16 %v647
    %v1031 = vunpack.c.l.b16 %v648
    %v1032 = vunpack.c.l.b16 %v649
    %v1033 = vunpack.c.l.b16 %v650
    %v1034 = vunpack.c.l.b16 %v651
    %v1035 = vunpack.c.l.b16 %v652
    %v1036 = vunpack.c.l.b16 %v653
    %v1037 = vunpack.c.l.b16 %v654
    %v1038 = vunpack.c.l.b16 %v655
    %v1039 = vunpack.c.l.b16 %v656
    %v1040 = vunpack.c.l.b16 %v657
    %v1041 = vpack.c.b16 %v1026, %v1025
    %v1042 = vpack.c.b16 %v1028, %v1027
    %v1043 = vpack.c.b16 %v1030, %v1029
    %v1044 = vpack.c.b16 %v1032, %v1031
    %v1045 = vpack.c.b16 %v1034, %v1033
    %v1046 = vpack.c.b16 %v1036, %v1035
    %v1047 = vpack.c.b16 %v1038, %v1037
    %v1048 = vpack.c.b16 %v1040, %v1039
    %1057 = vmatprep.subr.bf16.mxu0 0
    %1058 = vmatpush1.bf16.msra.mxu0 %v1048
    %1059 = vmatprep.subr.bf16.mxu0 0
    %1060 = vmatpush1.bf16.msra.mxu0 %v1047
    %1061 = vmatprep.subr.bf16.mxu0 0
    %1062 = vmatpush1.bf16.msra.mxu0 %v1046
    %1063 = vmatprep.subr.bf16.mxu0 0
    %1064 = vmatpush1.bf16.msra.mxu0 %v1045
    %1065 = vmatprep.subr.bf16.mxu0 0
    %1066 = vmatpush1.bf16.msra.mxu0 %v1044
    %1067 = vmatprep.subr.bf16.mxu0 0
    %1068 = vmatpush1.bf16.msra.mxu0 %v1043
    %1069 = vmatprep.subr.bf16.mxu0 0
    %1070 = vmatpush1.bf16.msra.mxu0 %v1042
    %1071 = vmatprep.subr.bf16.mxu0 0
    %1072 = vmatpush1.bf16.msra.mxu0 %v1041
    %1073 = vmatprep.subr.bf16.mxu0 0
    %1074 = vmatpush2.bf16.msra.mxu0 0
    %1075 = vmatprep.subr.bf16.mxu0 0
    %1076 = vmatpush2.bf16.msra.mxu0 0
    %1077 = vmatprep.subr.bf16.mxu0 0
    %1078 = vmatpush2.bf16.msra.mxu0 0
    %1079 = vmatprep.subr.bf16.mxu0 0
    %1080 = vmatpush2.bf16.msra.mxu0 0
    %1081 = vmatprep.subr.bf16.mxu0 0
    %1082 = vmatpush2.bf16.msra.mxu0 0
    %1083 = vmatprep.subr.bf16.mxu0 0
    %1084 = vmatpush2.bf16.msra.mxu0 0
    %1085 = vmatprep.subr.bf16.mxu0 0
    %1086 = vmatpush2.bf16.msra.mxu0 0
    %1087 = vmatprep.subr.bf16.mxu0 0
    %1088 = vmatpush2.bf16.msra.mxu0 0
    %1089 = vmatprep.mubr.bf16.mxu0 0
    %1090 = vmatmul.mubr.bf16.gmra.mxu0 %v1001
    %v1091 = vpop.f32.mrf.mxu0
    %v1092 = vadd.f32 %v1007, %v1091
    %v1093 = vpop.f32.mrf.mxu0
    %v1094 = vpop.f32.mrf.mxu0
    %v1095 = vadd.f32 %v1007, %v1094
    %v1096 = vpop.f32.mrf.mxu0
    %1097 = vmatprep.mubr.bf16.mxu0 0
    %1098 = vmatmul.mubr.bf16.gmra.mxu0 %v1002
    %v1099 = vpop.f32.mrf.mxu0
    %v1100 = vadd.f32 %v1007, %v1099
    %v1101 = vpop.f32.mrf.mxu0
    %v1102 = vpop.f32.mrf.mxu0
    %v1103 = vadd.f32 %v1007, %v1102
    %v1104 = vpop.f32.mrf.mxu0
    %1105 = vdwg.mxu0
    %1106 = vst [vmem:[%s15] sm:$0xff] %v890
    %1107 = vst [vmem:[%s15 + $0x8] sm:$0xff] %v893
    %1108 = vst [vmem:[%s16] sm:$0xff] %v1092
    %1109 = vst [vmem:[%s16 + $0x8] sm:$0xff] %v1095
    %1110 = vst [vmem:[%s16 + $0x10] sm:$0xff] %v1100
    %1111 = vst [vmem:[%s16 + $0x18] sm:$0xff] %v1103
    // Predicated region
    $region82: #{spectron_forward.1} parent=1 // pred_check
      _
    $region83: #{spectron_forward.1} parent=1 // pred_check_branch
      %1113 = sbr.rel (0) target = $region85
    $region84: #{spectron_forward.1} parent=1 // pred_region
      _
    $region85: #{spectron_forward.1} parent=1 // pred_fallthru
      _
    // Predicated region
    $region86: #{spectron_forward.1} parent=1 // pred_check
      _
    $region87: #{spectron_forward.1} parent=1 // pred_check_branch
      %1115 = sbr.rel (0) target = $region89
    $region88: #{spectron_forward.1} parent=1 // pred_region
      _
    $region89: #{spectron_forward.1} parent=1 // pred_fallthru
      _
    // Predicated region
    $region90: #{spectron_forward.1} parent=1 // pred_check
      _
    $region91: #{spectron_forward.1} parent=1 // pred_check_branch
      %1117 = sbr.rel (0) target = $region93
    $region92: #{spectron_forward.1} parent=1 // pred_region
      _
    $region93: #{spectron_forward.1} parent=1 // pred_fallthru
      _
    // Predicated region
    $region94: #{spectron_forward.1} parent=1 // pred_check
      _
    $region95: #{spectron_forward.1} parent=1 // pred_check_branch
      %1119 = sbr.rel (0) target = $region97
    $region96: #{spectron_forward.1} parent=1 // pred_region
      _
    $region97: #{spectron_forward.1} parent=1 // pred_fallthru
      _
    %1120 = vsyncpa [#allocation4], 1
    %1121 = vsyncpa [#allocation6], 1
    %1122 = vsyncpa [#allocation9], 1

</llo_original>
